<compile_context>
chip_gen: v5e
topology: v5e:2x2
jax: 0.10.0
libtpu: 0.0.40
codegen_flags: <defaults>
</compile_context>

<pallas_src>
import jax
import jax.numpy as jnp
from jax.experimental import pallas as pl
from jax.experimental.pallas import tpu as pltpu

# TODO(synk): base_tokenizer + base_lm (pretrained HF model) are not
# translatable to a Pallas kernel; lm_states (pooler_output) is synthesized
# in-script instead.


def _round_up(x, m):
    return (x + m - 1) // m * m


def _critic_linear_kernel(x_ref, w_ref, b_ref, o_ref):
    # x_ref: [TB, in_dim]      streamed batch tile (double-buffered by Pallas)
    # w_ref: [in_dim, out_dim] pre-transposed weight, VMEM-resident
    # b_ref: [1, out_dim]      f32 bias, VMEM-resident
    # o_ref: [TB, out_dim]     f32 output tile
    acc = jnp.dot(x_ref[...], w_ref[...], preferred_element_type=jnp.float32)
    o_ref[...] = (acc + b_ref[...]).astype(o_ref.dtype)


def _choose_batch_tile(B, in_dim, out_dim, itemsize, sublane,
                       target_tile_bytes, vmem_budget_bytes):
    """Rows per activation tile: byte-targeted, VMEM-capped, >= 2 grid steps."""
    b_rows = _round_up(B, sublane)

    # Target a few-MiB activation tile (HBM roofline saturates ~85% there).
    rows = max(target_tile_bytes // max(in_dim * itemsize, 1), sublane)

    # Keep the double-buffered footprint under the VMEM budget:
    #   2*tb*in_dim*itemsize (acts) + in_dim*out_dim*itemsize (weight)
    # + 2*tb*out_dim*4 (f32 out)    + out_dim*4 (bias)   <= vmem_budget_bytes
    per_row = 2 * in_dim * itemsize + 2 * out_dim * 4
    avail = max(vmem_budget_bytes - in_dim * out_dim * itemsize - out_dim * 4,
                per_row * sublane)
    rows = min(rows, avail // per_row)

    # Megacore (v7x) only helps with >= 2 grid steps to shard across TCs.
    if b_rows >= 2 * sublane:
        rows = min(rows, _round_up((b_rows + 1) // 2, sublane))

    rows = min(rows, b_rows)
    rows = max(rows // sublane * sublane, sublane)
    return rows


def critic_forward(lm_states, weight, bias, *,
                   target_tile_bytes=4 << 20,
                   vmem_budget_bytes=40 << 20,
                   vmem_limit_bytes=48 << 20,
                   min_pallas_bytes=1 << 20,
                   force_pallas=False):
    """Pallas implementation of `self.critic(lm_states)` = lm_states @ W.T + b.

    lm_states: [B, in_dim] float32 or bfloat16 (dtype preserved end-to-end;
               feed bf16 from the upstream LM to halve HBM read traffic)
    weight:    [out_dim, in_dim]  (PyTorch nn.Linear layout)
    bias:      [out_dim]
    returns:   [B, out_dim] float32
    """
    B, in_dim = lm_states.shape
    out_dim = weight.shape[0]
    act_dtype = lm_states.dtype
    itemsize = jnp.dtype(act_dtype).itemsize

    # Host-side one-time prep (weight is only 2*in_dim elements):
    #  - transpose to [in_dim, out_dim] so the body is a plain x @ w with no
    #    per-tile relayout of the weight operand on the XLU
    #  - cast to the activation dtype: deliberate precision choice (bf16 acts
    #    => bf16 weight on the MXU; accumulation stays f32)
    w_t = jnp.asarray(weight).T.astype(act_dtype)             # [in_dim, out_dim]
    b2d = jnp.asarray(bias).astype(jnp.float32).reshape(1, out_dim)

    sublane = 16 if act_dtype == jnp.bfloat16 else 8
    tb = _choose_batch_tile(B, in_dim, out_dim, itemsize, sublane,
                            target_tile_bytes, vmem_budget_bytes)
    grid_steps = pl.cdiv(B, tb)
    act_bytes = B * in_dim * itemsize

    # Tiny problems: a single-step custom call pays launch + pipeline
    # prologue/epilogue (~us) for zero overlap; plain XLA fusion wins.
    if not force_pallas and (grid_steps <= 1 or act_bytes < min_pallas_bytes):
        out = jnp.dot(lm_states, w_t, preferred_element_type=jnp.float32) + b2d
        return out.astype(jnp.float32)

    bytes_accessed = (act_bytes                                 # activation read
                      + in_dim * out_dim * w_t.dtype.itemsize   # weight
                      + out_dim * 4                             # bias
                      + B * out_dim * 4)                        # output write

    return pl.pallas_call(
        _critic_linear_kernel,
        out_shape=jax.ShapeDtypeStruct((B, out_dim), jnp.float32),
        grid_spec=pl.GridSpec(
            grid=(grid_steps,),
            in_specs=[
                # Activations stream tile-by-tile; last tile may be ragged
                # (Pallas clamps the boundary DMA and masks the store).
                pl.BlockSpec((tb, in_dim), lambda i: (i, 0)),
                # Weight & bias: constant block index -> VMEM-resident.
                pl.BlockSpec((in_dim, out_dim), lambda i: (0, 0)),
                pl.BlockSpec((1, out_dim), lambda i: (0, 0)),
            ],
            out_specs=pl.BlockSpec((tb, out_dim), lambda i: (i, 0)),
        ),
        compiler_params=pltpu.CompilerParams(
            # Independent batch tiles -> shard across TensorCores on v7x.
            dimension_semantics=("parallel",),
            vmem_limit_bytes=vmem_limit_bytes),
        cost_estimate=pl.CostEstimate(
            flops=2 * B * in_dim * out_dim,
            transcendentals=0,
            bytes_accessed=bytes_accessed),
    )(lm_states, w_t, b2d)


if __name__ == "__main__":
    # Shapes consistent with the module: out_dim is hard-coded to 2 in
    # __init__; in_dim = base-LM hidden size (kept small here).
    in_dim = 32
    out_dim = 2

    key = jax.random.PRNGKey(0)
    k_states, k_w, k_b, k_rag = jax.random.split(key, 4)

    # Deterministic nn.Linear-style init: U(-1/sqrt(in_dim), 1/sqrt(in_dim))
    bound = 1.0 / jnp.sqrt(jnp.float32(in_dim))
    weight = jax.random.uniform(
        k_w, (out_dim, in_dim), minval=-bound, maxval=bound, dtype=jnp.float32)
    bias = jax.random.uniform(
        k_b, (out_dim,), minval=-bound, maxval=bound, dtype=jnp.float32)

    # 1) Module-sized input (batch=2): stand-in for base_lm(...).pooler_output.
    #    Small problem -> takes the plain-XLA fallback path by design.
    lm_small = jax.random.normal(k_states, (2, in_dim), dtype=jnp.float32)
    out_small = jax.block_until_ready(critic_forward(lm_small, weight, bias))
    ref_small = lm_small @ weight.T + bias
    assert out_small.shape == (2, out_dim)
    assert jnp.allclose(out_small, ref_small, atol=1e-5, rtol=1e-5)

    # 2) Force the Pallas path on a small ragged batch: exercises the
    #    cdiv grid (2 steps) and the clamped/masked boundary block (no pad).
    lm_rag = jax.random.normal(k_rag, (20, in_dim), dtype=jnp.float32)
    out_rag = jax.block_until_ready(
        critic_forward(lm_rag, weight, bias, force_pallas=True))
    ref_rag = lm_rag @ weight.T + bias
    assert out_rag.shape == (20, out_dim)
    assert jnp.allclose(out_rag, ref_rag, atol=1e-5, rtol=1e-5)

    print("KERNEL_OK")
</pallas_src>

<mosaic_0001>
module attributes {stable_mosaic.version = 11 : i64} {
  func.func @_critic_linear_kernel(%arg0: i32, %arg1: memref<16x32xf32, #tpu.memory_space<vmem>>, %arg2: memref<32x2xf32, #tpu.memory_space<vmem>>, %arg3: memref<1x2xf32, #tpu.memory_space<vmem>>, %arg4: memref<16x2xf32, #tpu.memory_space<vmem>>) attributes {dimension_semantics = [#tpu.dimension_semantics<parallel>], iteration_bounds = array<i64: 2>, scalar_prefetch = 0 : i64, scratch_operands = 0 : i64, tpu.core_type = #tpu.core_type<tc>, window_params = [{transform_indices = @transform_0, window_bounds = array<i64: 16, 32>}, {pipeline_mode = #tpu.pipeline_mode<synchronous>, transform_indices = @transform_1, window_bounds = array<i64: 32, 2>}, {pipeline_mode = #tpu.pipeline_mode<synchronous>, transform_indices = @transform_2, window_bounds = array<i64: 1, 2>}, {transform_indices = @transform_3, window_bounds = array<i64: 16, 2>}]} {
    %c0 = arith.constant 0 : index
    %c0_0 = arith.constant 0 : index
    %0 = vector.load %arg1[%c0, %c0_0] : memref<16x32xf32, #tpu.memory_space<vmem>>, vector<16x32xf32>
    %c0_1 = arith.constant 0 : index
    %c0_2 = arith.constant 0 : index
    %1 = vector.load %arg2[%c0_1, %c0_2] : memref<32x2xf32, #tpu.memory_space<vmem>>, vector<32x2xf32>
    %cst = arith.constant dense<0.000000e+00> : vector<16x2xf32>
    %2 = tpu.matmul %0, %1, %cst {dimension_numbers = #tpu.dot_dimension_numbers<[1], [0], [0], [1], [0, 0, 1, 1], [], []>} : vector<16x32xf32>, vector<32x2xf32>, vector<16x2xf32> -> vector<16x2xf32>
    %c0_3 = arith.constant 0 : index
    %c0_4 = arith.constant 0 : index
    %3 = vector.load %arg3[%c0_3, %c0_4] : memref<1x2xf32, #tpu.memory_space<vmem>>, vector<1x2xf32>
    %4 = vector.broadcast %3 : vector<1x2xf32> to vector<16x2xf32>
    %5 = arith.addf %2, %4 : vector<16x2xf32>
    %c0_5 = arith.constant 0 : index
    %c0_6 = arith.constant 0 : index
    %6 = vector.load %arg4[%c0_5, %c0_6] : memref<16x2xf32, #tpu.memory_space<vmem>>, vector<16x2xf32>
    tpu.vector_store %arg4[%c0_5, %c0_6], %5 {strides = array<i32>} : memref<16x2xf32, #tpu.memory_space<vmem>>, vector<16x2xf32>,
    return
  }
  func.func @transform_0(%arg0: i32) -> (i32, i32) {
    %c0_i32 = arith.constant 0 : i32
    %c0_i32_0 = arith.constant 0 : i32
    return %arg0, %c0_i32 : i32, i32
  }
  func.func @transform_1(%arg0: i32) -> (i32, i32) {
    %c0_i32 = arith.constant 0 : i32
    %c0_i32_0 = arith.constant 0 : i32
    %c0_i32_1 = arith.constant 0 : i32
    return %c0_i32, %c0_i32_0 : i32, i32
  }
  func.func @transform_2(%arg0: i32) -> (i32, i32) {
    %c0_i32 = arith.constant 0 : i32
    %c0_i32_0 = arith.constant 0 : i32
    %c0_i32_1 = arith.constant 0 : i32
    return %c0_i32, %c0_i32_0 : i32, i32
  }
  func.func @transform_3(%arg0: i32) -> (i32, i32) {
    %c0_i32 = arith.constant 0 : i32
    %c0_i32_0 = arith.constant 0 : i32
    return %arg0, %c0_i32 : i32, i32
  }
}

</mosaic_0001>

<llo_original>
// kernel: tpu_custom_call.1
$region0: #{tpu_custom_call.1}
  #allocation0 [shape = 'u32[]', space=smem, size = 0x4, offset = 0x4, fixed_abs, tag = 'smem constant byte address 0x4 - core index']
  #allocation1 [shape = 'u32[72,128]{1,0:T(1,128)}', space=vmem, size = 0x9000, scoped, tag = 'internal scratch']
  %s0 = inlined_call_operand.vmem [shape: f32[20,32], index: 0, kind: input, shape index: {}]
  %s1 = inlined_call_operand.vmem [shape: f32[32,2], index: 1, kind: input, shape index: {}]
  %s2 = inlined_call_operand.vmem [shape: f32[1,2], index: 2, kind: input, shape index: {}]
  %s3 = inlined_call_operand.vmem [shape: f32[20,2], index: 3, kind: output, shape index: {}]
  %s4 = sld [smem:[#allocation0]]
  $region93: #{tpu_custom_call.1} parent=0
    _
  %s6 = ssub.s32 1, %s4
  %s7 = scalar_select 0, %s6, %s4
  $region1: #{tpu_custom_call.1} parent=0
    #allocation2 [shape = 'u8[16384]{0}', space=vmem, size = 0x4000, scoped, tag = 'output window, operand 0']
    loop: start=0, step=1, limit=4
    $region2: #{tpu_custom_call.1} parent=1 // loop_pre_header
      _
    $region3: #{tpu_custom_call.1} parent=1 // loop_header
      %s9 = sphi 0, %s13
      %p10 = scmp.ge.s32.totalorder %s9, 4
      %s19 = sphi 0, %s21
      %s22 = sphi 0, %s19
      %s23 = sphi 0, %s22
      %s39 = sphi 0, %s23
      %s43 = sphi 0, %s43
      %s45 = sphi 0, %s43
      %s46 = sphi 0, %s45
      %s60 = sphi 0, %s46
      %s64 = sphi 0, %s64
      %s66 = sphi 0, %s64
      %s67 = sphi 0, %s66
      %s81 = sphi 0, %s67
      %s87 = sphi 0, %s89
      %s90 = sphi 0, %s87
      %s91 = sphi 0, %s90
      %s107 = sphi 0, %s91
    $region4: #{tpu_custom_call.1} parent=1 // loop_header_branch
      %12 = sbr.rel (%p10) target = $region8
    $region5: #{tpu_custom_call.1} parent=1 // loop_body
      %s14 = ssub.s32 %s9, 1
      %s15 = ssub.s32 %s9, 2
      %s16 = sadd.s32 %s9, 1
      %s17 = ssub.s32 %s9, %s16
      %p18 = scmp.eq.s32.totalorder %s17, 0
      %s20 = sadd.s32 %s19, 1
      %s21 = scalar_select %p18, %s19, %s20
      %p24 = pneg %p18
      %p25 = scmp.eq.s32.totalorder %s9, 1
      %p26 = por %p24, %p25
      %p27 = scmp.ne.s32.totalorder %s19, %s22
      %p28 = scmp.eq.s32.totalorder %s9, 0
      %p29 = por %p27, %p28
      %p30 = scmp.ne.s32.totalorder %s19, %s22
      %p31 = scmp.eq.s32.totalorder %s14, 1
      %p32 = por %p30, %p31
      %p33 = scmp.ne.s32.totalorder %s22, %s23
      %p34 = scmp.eq.s32.totalorder %s14, 0
      %p35 = por %p33, %p34
      %p36 = scmp.ne.s32.totalorder %s22, %s23
      %p37 = scmp.eq.s32.totalorder %s15, 1
      %p38 = por %p36, %p37
      %p40 = scmp.ne.s32.totalorder %s23, %s39
      %p41 = scmp.eq.s32.totalorder %s15, 0
      %p42 = por %p40, %p41
      %s44 = sadd.s32 %s43, 1
      %p47 = scmp.eq.s32.totalorder %s9, 1
      %p48 = scmp.ne.s32.totalorder %s43, %s45
      %p49 = scmp.eq.s32.totalorder %s9, 0
      %p50 = por %p48, %p49
      %p51 = scmp.ne.s32.totalorder %s43, %s45
      %p52 = scmp.eq.s32.totalorder %s14, 1
      %p53 = por %p51, %p52
      %p54 = scmp.ne.s32.totalorder %s45, %s46
      %p55 = scmp.eq.s32.totalorder %s14, 0
      %p56 = por %p54, %p55
      %p57 = scmp.ne.s32.totalorder %s45, %s46
      %p58 = scmp.eq.s32.totalorder %s15, 1
      %p59 = por %p57, %p58
      %p61 = scmp.ne.s32.totalorder %s46, %s60
      %p62 = scmp.eq.s32.totalorder %s15, 0
      %p63 = por %p61, %p62
      %s65 = sadd.s32 %s64, 1
      %p68 = scmp.eq.s32.totalorder %s9, 1
      %p69 = scmp.ne.s32.totalorder %s64, %s66
      %p70 = scmp.eq.s32.totalorder %s9, 0
      %p71 = por %p69, %p70
      %p72 = scmp.ne.s32.totalorder %s64, %s66
      %p73 = scmp.eq.s32.totalorder %s14, 1
      %p74 = por %p72, %p73
      %p75 = scmp.ne.s32.totalorder %s66, %s67
      %p76 = scmp.eq.s32.totalorder %s14, 0
      %p77 = por %p75, %p76
      %p78 = scmp.ne.s32.totalorder %s66, %s67
      %p79 = scmp.eq.s32.totalorder %s15, 1
      %p80 = por %p78, %p79
      %p82 = scmp.ne.s32.totalorder %s67, %s81
      %p83 = scmp.eq.s32.totalorder %s15, 0
      %p84 = por %p82, %p83
      %s85 = ssub.s32 %s9, %s16
      %p86 = scmp.eq.s32.totalorder %s85, 0
      %s88 = sadd.s32 %s87, 1
      %s89 = scalar_select %p86, %s87, %s88
      %p92 = pneg %p86
      %p93 = scmp.eq.s32.totalorder %s9, 1
      %p94 = por %p92, %p93
      %p95 = scmp.ne.s32.totalorder %s87, %s90
      %p96 = scmp.eq.s32.totalorder %s9, 0
      %p97 = por %p95, %p96
      %p98 = scmp.ne.s32.totalorder %s87, %s90
      %p99 = scmp.eq.s32.totalorder %s14, 1
      %p100 = por %p98, %p99
      %p101 = scmp.ne.s32.totalorder %s90, %s91
      %p102 = scmp.eq.s32.totalorder %s14, 0
      %p103 = por %p101, %p102
      %p104 = scmp.ne.s32.totalorder %s90, %s91
      %p105 = scmp.eq.s32.totalorder %s15, 1
      %p106 = por %p104, %p105
      %p108 = scmp.ne.s32.totalorder %s91, %s107
      %p109 = scmp.eq.s32.totalorder %s15, 0
      %p110 = por %p108, %p109
      %p111 = scmp.le.s32.totalorder 1, %s9
      %p112 = scmp.lt.s32.totalorder %s9, 3
      %p113 = pnand %p111, %p112
      %p114 = pneg %p113
      // Predicated region
      $region9: #{tpu_custom_call.1} parent=5 // pred_check
        _
      $region10: #{tpu_custom_call.1} parent=5 // pred_check_branch
        %116 = sbr.rel (%p113) target = $region12
      $region11: #{tpu_custom_call.1} parent=5 // pred_region
        %s117 = ssub.s32 %s9, 1
        // Predicated region
        $region13: #{tpu_custom_call.1} parent=11 // pred_check
          %p118 = pneg %p56
        $region14: #{tpu_custom_call.1} parent=11 // pred_check_branch
          %120 = sbr.rel (%p118) target = $region16
        $region15: #{tpu_custom_call.1} parent=11 // pred_region
          _
        $region16: #{tpu_custom_call.1} parent=11 // pred_fallthru
          _
        // Predicated region
        $region17: #{tpu_custom_call.1} parent=11 // pred_check
          %p121 = pneg %p77
        $region18: #{tpu_custom_call.1} parent=11 // pred_check_branch
          %123 = sbr.rel (%p121) target = $region20
        $region19: #{tpu_custom_call.1} parent=11 // pred_region
          _
        $region20: #{tpu_custom_call.1} parent=11 // pred_fallthru
          _
      $region12: #{tpu_custom_call.1} parent=5 // pred_fallthru
        _
      %p124 = scmp.lt.s32.totalorder %s9, 2
      // Predicated region
      $region21: #{tpu_custom_call.1} parent=5 // pred_check
        %p125 = pneg %p124
      $region22: #{tpu_custom_call.1} parent=5 // pred_check_branch
        %127 = sbr.rel (%p125) target = $region24
      $region23: #{tpu_custom_call.1} parent=5 // pred_region
        // Predicated region
        $region25: #{tpu_custom_call.1} parent=23 // pred_check
          %p128 = pneg %p29
        $region26: #{tpu_custom_call.1} parent=23 // pred_check_branch
          %130 = sbr.rel (%p128) target = $region28
        $region27: #{tpu_custom_call.1} parent=23 // pred_region
          %s131 = smul.u32 2, %s9
          %s132 = ssub.s32 3, %s131
          %p133 = scmp.lt.s32.totalorder %s132, 2
          %s134 = scalar_select %p133, %s132, 2
          %s135 = smul.u32 8, %s134
          %p136 = scmp.lt.s32.totalorder %s131, 2
          %s137 = scalar_select %p136, %s131, 2
          %s138 = smul.addr %s137, 8
          %s139 = scalar_lea.vmem %s0, %s138
          %s140 = smul.u32 2, %s9
          %s141 = ssub.s32 3, %s140
          %p142 = scmp.lt.s32.totalorder %s141, 2
          %s143 = scalar_select %p142, %s141, 2
          %s144 = smul.u32 8, %s143
        $region28: #{tpu_custom_call.1} parent=23 // pred_fallthru
          _
      $region24: #{tpu_custom_call.1} parent=5 // pred_fallthru
        _
      %p145 = scmp.le.s32.totalorder 1, %s9
      %p146 = scmp.lt.s32.totalorder %s9, 3
      %p147 = pnand %p145, %p146
      %p148 = pneg %p147
      // Predicated region
      $region29: #{tpu_custom_call.1} parent=5 // pred_check
        _
      $region30: #{tpu_custom_call.1} parent=5 // pred_check_branch
        %150 = sbr.rel (%p147) target = $region32
      $region31: #{tpu_custom_call.1} parent=5 // pred_region
        %s151 = ssub.s32 %s9, 1
        %s152 = smul.u32 2, %s14
        %s153 = ssub.s32 3, %s152
        %p154 = scmp.lt.s32.totalorder %s153, 2
        %s155 = scalar_select %p154, %s153, 2
        %s156 = smul.u32 8, %s155
        %p157 = scmp.lt.s32.totalorder %s152, 2
        %s158 = scalar_select %p157, %s152, 2
        %s159 = smul.addr %s158, 8
        %s160 = scalar_lea.vmem %s0, %s159
        %p161 = pneg %p35
        %p162 = pneg %p32
        %p163 = pneg %p56
        %p164 = pneg %p53
        %p165 = pneg %p77
        %p166 = pneg %p74
        %p167 = pneg %p103
        %p168 = pneg %p100
        %s169 = sand.u32 %s90, 1
        %s170 = sand.u32 %s90, 1
        %s171 = smul.addr %s170, 16
        %s172 = scalar_lea.vmem [#allocation2], %s171
        %s173 = smul.u32 2, %s14
        %s174 = ssub.s32 3, %s173
        %p175 = scmp.lt.s32.totalorder %s174, 2
        %s176 = scalar_select %p175, %s174, 2
        %s177 = smul.u32 8, %s176
        %p178 = scmp.lt.s32.totalorder %s173, 2
        %s179 = scalar_select %p178, %s173, 2
        %s180 = smul.addr %s179, 8
        %s181 = scalar_lea.vmem %s0, %s180
        %s182 = smul.u32 2, %s14
        %s183 = ssub.s32 3, %s182
        %p184 = scmp.lt.s32.totalorder %s183, 2
        %s185 = scalar_select %p184, %s183, 2
        %s186 = smul.u32 8, %s185
        %s187 = smul.u32 2, %s14
        %s188 = ssub.s32 3, %s187
        %p189 = scmp.lt.s32.totalorder %s188, 2
        %s190 = scalar_select %p189, %s188, 2
        %s191 = smul.u32 8, %s190
        %v192 = vld [vmem:[%s181] sm:$0xff]
        %v193 = vld [vmem:[%s181 + $0x8] sm:$0xff]
        %v194 = vld [vmem:[%s1] sm:$0xff]
        %v195 = vld [vmem:[%s1 + $0x8] sm:$0xff]
        %v196 = vld [vmem:[%s1 + $0x10] sm:$0xff]
        %v197 = vld [vmem:[%s1 + $0x18] sm:$0xff]
        %v198 = vld [vmem:[%s2] sm:$0x1]
        %v200 = vperm.slane %v198, 0
        %vm202 = vcmask 261120
        %v204 = vsel %vm202, %v192, 0
        %v207 = vsel %vm202, %v193, 0
        %209 = vmatpush.msra.mxu0 0.0
        %210 = vmatpush.msra.mxu0 0.0
        %211 = vmatpush.msra.mxu0 0.0
        %212 = vmatpush.msra.mxu0 0.0
        %213 = vmatpush.msra.mxu0 0.0
        %214 = vmatpush.msra.mxu0 0.0
        %215 = vmatpush.msra.mxu0 0.0
        %216 = vmatpush.msra.mxu0 0.0
        %217 = vmatpush.msra.mxu0 0.0
        %218 = vmatpush.msra.mxu0 0.0
        %219 = vmatpush.msra.mxu0 0.0
        %220 = vmatpush.msra.mxu0 0.0
        %221 = vmatpush.msra.mxu0 %v197
        %222 = vmatpush.msra.mxu0 %v196
        %223 = vmatpush.msra.mxu0 %v195
        %224 = vmatpush.msra.mxu0 %v194
        %225 = vmatmul.f32.gmra.mxu0 %v204
        %v226 = vpop.f32.mrf.mxu0
        %v227 = vadd.f32 %v200, %v226
        %228 = vmatmul.f32.gmra.mxu0 %v207
        %v229 = vpop.f32.mrf.mxu0
        %v230 = vadd.f32 %v200, %v229
        %231 = vdwg.mxu0
        %vm232 = vcmask 15360
        %233 = vst.msk [vmem:[%s172] sm:$0xff] %vm232, %v227
        %234 = vst.msk [vmem:[%s172 + $0x8] sm:$0xff] %vm232, %v230
        %s235 = sand.u32 %s90, 1
        %s236 = sand.u32 %s90, 1
        %s237 = smul.addr %s236, 16
        %s238 = scalar_lea.vmem [#allocation2], %s237
        // Predicated region
        $region33: #{tpu_custom_call.1} parent=31 // pred_check
          %p239 = pneg %p100
        $region34: #{tpu_custom_call.1} parent=31 // pred_check_branch
          %241 = sbr.rel (%p239) target = $region36
        $region35: #{tpu_custom_call.1} parent=31 // pred_region
          %s242 = smul.u32 2, %s14
          %s243 = ssub.s32 3, %s242
          %p244 = scmp.lt.s32.totalorder %s243, 2
          %s245 = scalar_select %p244, %s243, 2
          %s246 = smul.u32 8, %s245
          %p247 = scmp.ne.s32.totalorder 0, %s246
          %s248 = smul.addr %s242, 8
          %s249 = scalar_lea.vmem %s3, %s248
          // Predicated region
          $region37: #{tpu_custom_call.1} parent=35 // pred_check
            %p250 = pneg %p247
          $region38: #{tpu_custom_call.1} parent=35 // pred_check_branch
            %252 = sbr.rel (%p250) target = $region40
          $region39: #{tpu_custom_call.1} parent=35 // pred_region
            // Predicated region
            $region41: #{tpu_custom_call.1} parent=39 // pred_check
              _
            $region42: #{tpu_custom_call.1} parent=39 // pred_check_branch
              %254 = sbr.rel (0) target = $region44
            $region43: #{tpu_custom_call.1} parent=39 // pred_region
              // Predicated region
              $region63: #{tpu_custom_call.1} parent=43 // pred_check
                _
              $region64: #{tpu_custom_call.1} parent=43 // pred_check_branch
                %306 = sbr.rel (0) target = $region66
              $region65: #{tpu_custom_call.1} parent=43 // pred_region
                %s307 = sshrl.u32 %s245, 1
                // While loop
                $region67: #{tpu_custom_call.1} parent=65 // loop_pre_header
                  _
                $region68: #{tpu_custom_call.1} parent=65 // loop_header
                  %s309 = sphi 0, %s311
                  %p310 = scmp.ge.s32.totalorder %s309, %s307
                  %s314 = sphi 0, %s323
                  %s315 = sphi %s238, %s326
                  %s316 = sphi %s249, %s327
                $region69: #{tpu_custom_call.1} parent=65 // loop_header_branch
                  %313 = sbr.rel (%p310) target = $region73
                $region70: #{tpu_custom_call.1} parent=65 // loop_body
                  %v317 = vld [vmem:[%s315] sm:$0xff]
                  %318 = vst [vmem:[%s316] sm:$0xff] %v317
                  %v319 = vld [vmem:[%s315 + $0x8] sm:$0xff]
                  %320 = vst [vmem:[%s316 + $0x8] sm:$0xff] %v319
                  %s321 = sadd.s32 1, %s314
                  %p322 = scmp.ge.s32.totalorder %s321, %s307
                  %s323 = scalar_select %p322, 0, %s321
                  %s324 = smul.u32 %s323, 16
                  %s325 = smul.u32 %s323, 16
                  %s326 = scalar_lea.vmem %s238, %s324 [#allocation2]
                  %s327 = scalar_lea.vmem %s249, %s325
                $region71: #{tpu_custom_call.1} parent=65 // loop_footer
                  %s311 = sadd.s32 %s309, 1
                $region72: #{tpu_custom_call.1} parent=65 // loop_footer_branch
                  %308 = sbr.rel target = $region68
                $region73: #{tpu_custom_call.1} parent=65 // loop_exit
                  _
                %s328 = sshrl.u32 %s245, 1
                %s329 = sand.u32 %s245, 1
                %s330 = smul.u32 %s328, 2
                %s331 = smul.u32 8, %s330
                %s332 = scalar_lea.vmem %s238, %s331 [#allocation2]
                %s333 = smul.u32 8, %s330
                %s334 = scalar_lea.vmem %s249, %s333
                // While loop
                $region74: #{tpu_custom_call.1} parent=65 // loop_pre_header
                  _
                $region75: #{tpu_custom_call.1} parent=65 // loop_header
                  %s336 = sphi 0, %s338
                  %p337 = scmp.ge.s32.totalorder %s336, %s329
                  %s341 = sphi 0, %s348
                  %s342 = sphi %s332, %s351
                  %s343 = sphi %s334, %s352
                $region76: #{tpu_custom_call.1} parent=65 // loop_header_branch
                  %340 = sbr.rel (%p337) target = $region80
                $region77: #{tpu_custom_call.1} parent=65 // loop_body
                  %v344 = vld [vmem:[%s342] sm:$0xff]
                  %345 = vst [vmem:[%s343] sm:$0xff] %v344
                  %s346 = sadd.s32 1, %s341
                  %p347 = scmp.ge.s32.totalorder %s346, %s329
                  %s348 = scalar_select %p347, 0, %s346
                  %s349 = smul.u32 %s348, 8
                  %s350 = smul.u32 %s348, 8
                  %s351 = scalar_lea.vmem %s332, %s349 [#allocation2]
                  %s352 = scalar_lea.vmem %s334, %s350
                $region78: #{tpu_custom_call.1} parent=65 // loop_footer
                  %s338 = sadd.s32 %s336, 1
                $region79: #{tpu_custom_call.1} parent=65 // loop_footer_branch
                  %335 = sbr.rel target = $region75
                $region80: #{tpu_custom_call.1} parent=65 // loop_exit
                  _
              $region66: #{tpu_custom_call.1} parent=43 // pred_fallthru
                _
              // Predicated region
              $region81: #{tpu_custom_call.1} parent=43 // pred_check
                _
              $region82: #{tpu_custom_call.1} parent=43 // pred_check_branch
                %354 = sbr.rel target = $region84
              $region83: #{tpu_custom_call.1} parent=43 // pred_region
                _
              $region84: #{tpu_custom_call.1} parent=43 // pred_fallthru
                _
            $region44: #{tpu_custom_call.1} parent=39 // pred_fallthru
              _
            // Predicated region
            $region45: #{tpu_custom_call.1} parent=39 // pred_check
              _
            $region46: #{tpu_custom_call.1} parent=39 // pred_check_branch
              %256 = sbr.rel target = $region48
            $region47: #{tpu_custom_call.1} parent=39 // pred_region
              %s258 = ssub.s32 256, 1
              %s259 = sshrl.u32 %s245, 1
              // While loop
              $region49: #{tpu_custom_call.1} parent=47 // loop_pre_header
                _
              $region50: #{tpu_custom_call.1} parent=47 // loop_header
                %s261 = sphi 0, %s263
                %p262 = scmp.ge.s32.totalorder %s261, %s259
                %s266 = sphi 0, %s275
                %s267 = sphi %s238, %s278
                %s268 = sphi %s249, %s279
              $region51: #{tpu_custom_call.1} parent=47 // loop_header_branch
                %265 = sbr.rel (%p262) target = $region55
              $region52: #{tpu_custom_call.1} parent=47 // loop_body
                %v269 = vld [vmem:[%s267] sm:%s258]
                %270 = vst [vmem:[%s268] sm:%s258] %v269
                %v271 = vld [vmem:[%s267 + $0x8] sm:%s258]
                %272 = vst [vmem:[%s268 + $0x8] sm:%s258] %v271
                %s273 = sadd.s32 1, %s266
                %p274 = scmp.ge.s32.totalorder %s273, %s259
                %s275 = scalar_select %p274, 0, %s273
                %s276 = smul.u32 %s275, 16
                %s277 = smul.u32 %s275, 16
                %s278 = scalar_lea.vmem %s238, %s276 [#allocation2]
                %s279 = scalar_lea.vmem %s249, %s277
              $region53: #{tpu_custom_call.1} parent=47 // loop_footer
                %s263 = sadd.s32 %s261, 1
              $region54: #{tpu_custom_call.1} parent=47 // loop_footer_branch
                %260 = sbr.rel target = $region50
              $region55: #{tpu_custom_call.1} parent=47 // loop_exit
                _
              %s280 = sshrl.u32 %s245, 1
              %s281 = sand.u32 %s245, 1
              %s282 = smul.u32 %s280, 2
              %s283 = smul.u32 8, %s282
              %s284 = scalar_lea.vmem %s238, %s283 [#allocation2]
              %s285 = smul.u32 8, %s282
              %s286 = scalar_lea.vmem %s249, %s285
              // While loop
              $region56: #{tpu_custom_call.1} parent=47 // loop_pre_header
                _
              $region57: #{tpu_custom_call.1} parent=47 // loop_header
                %s288 = sphi 0, %s290
                %p289 = scmp.ge.s32.totalorder %s288, %s281
                %s293 = sphi 0, %s300
                %s294 = sphi %s284, %s303
                %s295 = sphi %s286, %s304
              $region58: #{tpu_custom_call.1} parent=47 // loop_header_branch
                %292 = sbr.rel (%p289) target = $region62
              $region59: #{tpu_custom_call.1} parent=47 // loop_body
                %v296 = vld [vmem:[%s294] sm:%s258]
                %297 = vst [vmem:[%s295] sm:%s258] %v296
                %s298 = sadd.s32 1, %s293
                %p299 = scmp.ge.s32.totalorder %s298, %s281
                %s300 = scalar_select %p299, 0, %s298
                %s301 = smul.u32 %s300, 8
                %s302 = smul.u32 %s300, 8
                %s303 = scalar_lea.vmem %s284, %s301 [#allocation2]
                %s304 = scalar_lea.vmem %s286, %s302
              $region60: #{tpu_custom_call.1} parent=47 // loop_footer
                %s290 = sadd.s32 %s288, 1
              $region61: #{tpu_custom_call.1} parent=47 // loop_footer_branch
                %287 = sbr.rel target = $region57
              $region62: #{tpu_custom_call.1} parent=47 // loop_exit
                _
            $region48: #{tpu_custom_call.1} parent=39 // pred_fallthru
              _
          $region40: #{tpu_custom_call.1} parent=35 // pred_fallthru
            _
          %355 = vnop
        $region36: #{tpu_custom_call.1} parent=31 // pred_fallthru
          _
      $region32: #{tpu_custom_call.1} parent=5 // pred_fallthru
        _
      %p356 = scmp.le.s32.totalorder 2, %s9
      // Predicated region
      $region85: #{tpu_custom_call.1} parent=5 // pred_check
        %p357 = pneg %p356
      $region86: #{tpu_custom_call.1} parent=5 // pred_check_branch
        %359 = sbr.rel (%p357) target = $region88
      $region87: #{tpu_custom_call.1} parent=5 // pred_region
        %s360 = ssub.s32 %s9, 2
        // Predicated region
        $region89: #{tpu_custom_call.1} parent=87 // pred_check
          %p361 = pneg %p106
        $region90: #{tpu_custom_call.1} parent=87 // pred_check_branch
          %363 = sbr.rel (%p361) target = $region92
        $region91: #{tpu_custom_call.1} parent=87 // pred_region
          %s364 = sand.u32 %s91, 1
          %s365 = sand.u32 %s91, 1
          %s366 = smul.addr %s365, 16
          %s367 = scalar_lea.vmem [#allocation2], %s366
        $region92: #{tpu_custom_call.1} parent=87 // pred_fallthru
          _
      $region88: #{tpu_custom_call.1} parent=5 // pred_fallthru
        _
    $region6: #{tpu_custom_call.1} parent=1 // loop_footer
      %s13 = sadd.s32 1, %s9
    $region7: #{tpu_custom_call.1} parent=1 // loop_footer_branch
      %8 = sbr.rel target = $region3
    $region8: #{tpu_custom_call.1} parent=1 // loop_exit
      _

</llo_original>
